<compile_context>
chip_gen: v5e
topology: v5e:2x2
jax: 0.10.0
libtpu: 0.0.40
codegen_flags: <defaults>
</compile_context>

<pallas_src>
import jax
import jax.numpy as jnp
from jax.experimental import pallas as pl
from jax.experimental.pallas import tpu as pltpu


def _round_up(x, m):
    return ((x + m - 1) // m) * m


def _kernel_direct(x_ref, w_ref, b_ref, o_ref):
    """y = tanh(x @ w + b), accumulating straight into the f32 output tile.

    x_ref: (tm, tk), w_ref: (tk, tn) (weight already transposed host-side),
    b_ref: (1, tn) f32, o_ref: (tm, tn) f32, resident across the K grid axis.
    """
    k = pl.program_id(2)

    @pl.when(k == 0)
    def _():
        o_ref[...] = jnp.zeros_like(o_ref)

    o_ref[...] += jnp.dot(x_ref[...], w_ref[...],
                          preferred_element_type=jnp.float32)

    @pl.when(k == pl.num_programs(2) - 1)
    def _():
        # Bias + tanh once per output tile; tanh lands on the EUP slot.
        o_ref[...] = jnp.tanh(o_ref[...] + b_ref[...])


def _kernel_scratch(x_ref, w_ref, b_ref, o_ref, acc_ref):
    """Same as _kernel_direct but with an f32 accumulator, for non-f32 outputs."""
    k = pl.program_id(2)

    @pl.when(k == 0)
    def _():
        acc_ref[...] = jnp.zeros_like(acc_ref)

    acc_ref[...] += jnp.dot(x_ref[...], w_ref[...],
                            preferred_element_type=jnp.float32)

    @pl.when(k == pl.num_programs(2) - 1)
    def _():
        o_ref[...] = jnp.tanh(acc_ref[...] + b_ref[...]).astype(o_ref.dtype)


def _default_tiles():
    """Per-generation default tile caps (tm, tn, tk)."""
    kind = ""
    try:
        kind = jax.devices()[0].device_kind.lower()
    except Exception:
        pass
    if "v5 lite" in kind or "v5e" in kind or "v5lite" in kind:
        # v5e: 1 vector-store slot + 16 MiB scoped-VMEM default -> keep 256
        # M/N tiles, but a long K tile to cut per-step accumulator traffic.
        return 256, 256, 1024
    # v6e / v7x: 2x256x256 MXU likes 512-wide M/N tiles; ~12 MiB total fits
    # both the 128 MiB (v6e) and 64 MiB-per-TC (v7x) VMEM comfortably.
    return 512, 512, 1024


def brainline_forward(x, weight, bias, *, tm=None, tn=None, tk=None,
                      operand_dtype=None):
    """y = tanh(x @ weight.T + bias).

    x: (..., K), weight: (N, K) (PyTorch nn.Linear layout), bias: (N,).
    `operand_dtype` (e.g. jnp.bfloat16) optionally casts the matmul operands
    for the MXU-native fast path on v6e/v7x; accumulation stays f32.
    """
    d_tm, d_tn, d_tk = _default_tiles()
    tm = d_tm if tm is None else tm
    tn = d_tn if tn is None else tn
    tk = d_tk if tk is None else tk

    *lead, K = x.shape
    N = weight.shape[0]
    M = 1
    for d in lead:
        M *= d
    x2d = x.reshape(M, K)
    out_dtype = x.dtype

    # Clamp tiles to the (alignment-rounded) problem size.  Using
    # round_up(N,128)/round_up(K,128) as the per-dim size (up to the cap)
    # keeps modest N/K in a single lane-dense tile instead of splitting and
    # padding (e.g. N=384 -> one 384-wide tile, not 2x256 with dead columns).
    tm = min(tm, _round_up(M, 8))
    tn = min(tn, _round_up(N, 128))
    tk = min(tk, _round_up(K, 128))
    Mp, Np, Kp = _round_up(M, tm), _round_up(N, tn), _round_up(K, tk)

    # If everything fits one (M, N) tile, split M so megacore / v7x 2-TC
    # chips have at least two parallel tiles to shard.
    if (Mp // tm) * (Np // tn) < 2 and M >= 16:
        tm = _round_up(pl.cdiv(M, 2), 8)
        Mp = _round_up(M, tm)

    # Pad only the dims that actually need it: the aligned case is copy-free
    # apart from the one-time weight transpose.  Zero-padding along K
    # contributes nothing to the contraction; padded M/N are sliced off.
    if Mp != M or Kp != K:
        x2d = jnp.pad(x2d, ((0, Mp - M), (0, Kp - K)))
    w_t = weight.T  # (K, N): transpose once here so the kernel never does
    if Kp != K or Np != N:
        w_t = jnp.pad(w_t, ((0, Kp - K), (0, Np - N)))
    b2d = bias.reshape(1, N).astype(jnp.float32)
    if Np != N:
        b2d = jnp.pad(b2d, ((0, 0), (0, Np - N)))

    if operand_dtype is not None:
        x2d = x2d.astype(operand_dtype)
        w_t = w_t.astype(operand_dtype)

    grid = (Mp // tm, Np // tn, Kp // tk)

    itemsize = jnp.dtype(x2d.dtype).itemsize
    cost = pl.CostEstimate(
        flops=2 * Mp * Np * Kp,
        transcendentals=Mp * Np,
        # Account for the x re-read across j and the W re-read across i.
        bytes_accessed=(itemsize * (Mp * Kp * (Np // tn) + Kp * Np * (Mp // tm))
                        + 4 * (Mp * Np + Np)),
    )

    direct = (out_dtype == jnp.float32)
    kernel = _kernel_direct if direct else _kernel_scratch
    scratch = [] if direct else [pltpu.VMEM((tm, tn), jnp.float32)]

    vmem_est = (2 * (tm * tk + tk * tn) * itemsize                 # x, W (x2 buf)
                + 2 * tm * tn * jnp.dtype(out_dtype).itemsize      # output
                + (0 if direct else tm * tn * 4)                   # f32 scratch
                + 2 * tn * 4)                                      # bias
    # Safe on all generations (<= 48 MiB, under v7x's 64 MiB per TensorCore).
    vmem_limit = int(max(32 * 1024 * 1024, min(48 * 1024 * 1024, 2 * vmem_est)))

    out_p = pl.pallas_call(
        kernel,
        out_shape=jax.ShapeDtypeStruct((Mp, Np), out_dtype),
        grid_spec=pltpu.PrefetchScalarGridSpec(
            num_scalar_prefetch=0,
            grid=grid,
            in_specs=[
                pl.BlockSpec((tm, tk), lambda i, j, k: (i, k)),   # x tile
                pl.BlockSpec((tk, tn), lambda i, j, k: (k, j)),   # W.T tile
                pl.BlockSpec((1, tn), lambda i, j, k: (0, j)),    # bias tile
            ],
            out_specs=pl.BlockSpec((tm, tn), lambda i, j, k: (i, j)),
            scratch_shapes=scratch,
        ),
        compiler_params=pltpu.CompilerParams(
            dimension_semantics=("parallel", "parallel", "arbitrary"),
            vmem_limit_bytes=vmem_limit),
        cost_estimate=cost,
    )(x2d, w_t, b2d)

    out = out_p
    if Mp != M or Np != N:
        out = out_p[:M, :N]
    return out.reshape(*lead, N)


if __name__ == "__main__":
    key = jax.random.PRNGKey(0)

    # --- Small test matching the module's forward: (batch, seq, inputs). ---
    batch, seq, inputs, outputs = 2, 8, 32, 32
    kx, kw, kb, key = jax.random.split(key, 4)
    x = jax.random.uniform(kx, (batch, seq, inputs), dtype=jnp.float32)
    bound = 1.0 / (inputs ** 0.5)
    weight = jax.random.uniform(kw, (outputs, inputs), dtype=jnp.float32,
                                minval=-bound, maxval=bound)
    bias = jax.random.uniform(kb, (outputs,), dtype=jnp.float32,
                              minval=-bound, maxval=bound)

    y = jax.block_until_ready(brainline_forward(x, weight, bias))
    y_ref = jnp.tanh(
        jnp.dot(x, weight.T, preferred_element_type=jnp.float32) + bias)
    assert y.shape == (batch, seq, outputs)
    assert jnp.allclose(y, y_ref, atol=1e-5, rtol=1e-5)

    # --- Larger test: multi-tile M grid (split for 2 parallel tiles), single
    # lane-dense N tile (N=384, no N padding), multi-step K accumulation and
    # the K-padding path (K=1536 -> Kp=2048 with default tk=1024). ---
    b2, s2, in2, out2 = 4, 128, 1536, 384
    kx2, kw2, kb2, key = jax.random.split(key, 4)
    x2 = jax.random.uniform(kx2, (b2, s2, in2), dtype=jnp.float32)
    bound2 = 1.0 / (in2 ** 0.5)
    w2 = jax.random.uniform(kw2, (out2, in2), dtype=jnp.float32,
                            minval=-bound2, maxval=bound2)
    bz2 = jax.random.uniform(kb2, (out2,), dtype=jnp.float32,
                             minval=-bound2, maxval=bound2)

    y2 = jax.block_until_ready(brainline_forward(x2, w2, bz2))
    y2_ref = jnp.tanh(
        jnp.dot(x2, w2.T, preferred_element_type=jnp.float32) + bz2)
    assert y2.shape == (b2, s2, out2)
    assert jnp.allclose(y2, y2_ref, atol=1e-4, rtol=1e-4)

    # --- bf16-operand fast path (MXU-native on v6e/v7x), f32 accumulation. ---
    y3 = jax.block_until_ready(
        brainline_forward(x2, w2, bz2, operand_dtype=jnp.bfloat16))
    assert y3.shape == (b2, s2, out2)
    assert jnp.allclose(y3, y2_ref, atol=5e-2, rtol=5e-2)

    print("KERNEL_OK")
</pallas_src>

<mosaic_0001>
module attributes {stable_mosaic.version = 11 : i64} {
  func.func @_kernel_direct(%arg0: i32, %arg1: i32, %arg2: i32, %arg3: memref<8x128xf32, #tpu.memory_space<vmem>>, %arg4: memref<128x128xf32, #tpu.memory_space<vmem>>, %arg5: memref<1x128xf32, #tpu.memory_space<vmem>>, %arg6: memref<8x128xf32, #tpu.memory_space<vmem>>) attributes {dimension_semantics = [#tpu.dimension_semantics<parallel>, #tpu.dimension_semantics<parallel>, #tpu.dimension_semantics<arbitrary>], iteration_bounds = array<i64: 2, 1, 1>, scalar_prefetch = 0 : i64, scratch_operands = 0 : i64, tpu.core_type = #tpu.core_type<tc>, window_params = [{transform_indices = @transform_0, window_bounds = array<i64: 8, 128>}, {transform_indices = @transform_1, window_bounds = array<i64: 128, 128>}, {transform_indices = @transform_2, window_bounds = array<i64: 1, 128>}, {transform_indices = @transform_3, window_bounds = array<i64: 8, 128>}]} {
    %c0_i32 = arith.constant 0 : i32
    %0 = arith.cmpi eq, %arg2, %c0_i32 : i32
    %1 = arith.extui %0 : i1 to i32
    %c0_i32_0 = arith.constant 0 : i32
    %2 = arith.cmpi ne, %1, %c0_i32_0 : i32
    scf.if %2 {
      %cst_10 = arith.constant 0.000000e+00 : f32
      %12 = vector.broadcast %cst_10 : f32 to vector<8x128xf32>
      %c0_11 = arith.constant 0 : index
      %c0_12 = arith.constant 0 : index
      %13 = vector.load %arg6[%c0_11, %c0_12] : memref<8x128xf32, #tpu.memory_space<vmem>>, vector<8x128xf32>
      tpu.vector_store %arg6[%c0_11, %c0_12], %12 {strides = array<i32>} : memref<8x128xf32, #tpu.memory_space<vmem>>, vector<8x128xf32>,
    } else {
    }
    %c0 = arith.constant 0 : index
    %c0_1 = arith.constant 0 : index
    %3 = vector.load %arg6[%c0, %c0_1] : memref<8x128xf32, #tpu.memory_space<vmem>>, vector<8x128xf32>
    %c0_2 = arith.constant 0 : index
    %c0_3 = arith.constant 0 : index
    %4 = vector.load %arg3[%c0_2, %c0_3] : memref<8x128xf32, #tpu.memory_space<vmem>>, vector<8x128xf32>
    %c0_4 = arith.constant 0 : index
    %c0_5 = arith.constant 0 : index
    %5 = vector.load %arg4[%c0_4, %c0_5] : memref<128x128xf32, #tpu.memory_space<vmem>>, vector<128x128xf32>
    %cst = arith.constant dense<0.000000e+00> : vector<8x128xf32>
    %6 = tpu.matmul %4, %5, %cst {dimension_numbers = #tpu.dot_dimension_numbers<[1], [0], [0], [1], [0, 0, 1, 1], [], []>} : vector<8x128xf32>, vector<128x128xf32>, vector<8x128xf32> -> vector<8x128xf32>
    %7 = arith.addf %3, %6 : vector<8x128xf32>
    %c0_6 = arith.constant 0 : index
    %c0_7 = arith.constant 0 : index
    %8 = vector.load %arg6[%c0_6, %c0_7] : memref<8x128xf32, #tpu.memory_space<vmem>>, vector<8x128xf32>
    tpu.vector_store %arg6[%c0_6, %c0_7], %7 {strides = array<i32>} : memref<8x128xf32, #tpu.memory_space<vmem>>, vector<8x128xf32>,
    %c0_i32_8 = arith.constant 0 : i32
    %9 = arith.cmpi eq, %arg2, %c0_i32_8 : i32
    %10 = arith.extui %9 : i1 to i32
    %c0_i32_9 = arith.constant 0 : i32
    %11 = arith.cmpi ne, %10, %c0_i32_9 : i32
    scf.if %11 {
      %c0_10 = arith.constant 0 : index
      %c0_11 = arith.constant 0 : index
      %12 = vector.load %arg6[%c0_10, %c0_11] : memref<8x128xf32, #tpu.memory_space<vmem>>, vector<8x128xf32>
      %c0_12 = arith.constant 0 : index
      %c0_13 = arith.constant 0 : index
      %13 = vector.load %arg5[%c0_12, %c0_13] : memref<1x128xf32, #tpu.memory_space<vmem>>, vector<1x128xf32>
      %14 = vector.broadcast %13 : vector<1x128xf32> to vector<8x128xf32>
      %15 = arith.addf %12, %14 : vector<8x128xf32>
      %16 = math.tanh %15 : vector<8x128xf32>
      %c0_14 = arith.constant 0 : index
      %c0_15 = arith.constant 0 : index
      %17 = vector.load %arg6[%c0_14, %c0_15] : memref<8x128xf32, #tpu.memory_space<vmem>>, vector<8x128xf32>
      tpu.vector_store %arg6[%c0_14, %c0_15], %16 {strides = array<i32>} : memref<8x128xf32, #tpu.memory_space<vmem>>, vector<8x128xf32>,
    } else {
    }
    return
  }
  func.func @transform_0(%arg0: i32, %arg1: i32, %arg2: i32) -> (i32, i32) {
    %c0_i32 = arith.constant 0 : i32
    return %arg0, %arg2 : i32, i32
  }
  func.func @transform_1(%arg0: i32, %arg1: i32, %arg2: i32) -> (i32, i32) {
    %c0_i32 = arith.constant 0 : i32
    return %arg2, %arg1 : i32, i32
  }
  func.func @transform_2(%arg0: i32, %arg1: i32, %arg2: i32) -> (i32, i32) {
    %c0_i32 = arith.constant 0 : i32
    %c0_i32_0 = arith.constant 0 : i32
    return %c0_i32, %arg1 : i32, i32
  }
  func.func @transform_3(%arg0: i32, %arg1: i32, %arg2: i32) -> (i32, i32) {
    %c0_i32 = arith.constant 0 : i32
    return %arg0, %arg1 : i32, i32
  }
}

</mosaic_0001>

<llo_original>
// kernel: tpu_custom_call.1
$region0: #{tpu_custom_call.1}
  #allocation0 [shape = 'u32[]', space=smem, size = 0x4, offset = 0x4, fixed_abs, tag = 'smem constant byte address 0x4 - core index']
  #allocation1 [shape = 'u32[72,128]{1,0:T(1,128)}', space=vmem, size = 0x9000, scoped, tag = 'internal scratch']
  %s0 = inlined_call_operand.hbm [shape: f32[16,128], index: 0, kind: input, shape index: {}]
  %s1 = inlined_call_operand.hbm [shape: f32[128,128], index: 1, kind: input, shape index: {}]
  %s2 = inlined_call_operand.vmem [shape: f32[1,128], index: 2, kind: input, shape index: {}]
  %s3 = inlined_call_operand.hbm [shape: f32[16,128], index: 3, kind: output, shape index: {}]
  %s4 = sld [smem:[#allocation0]]
  $region61: #{tpu_custom_call.1} parent=0
    _
  %s6 = ssub.s32 1, %s4
  %s7 = scalar_select 0, %s6, %s4
  $region1: #{tpu_custom_call.1} parent=0
    #allocation2 [shape = 'u8[8192]{0}', space=vmem, size = 0x2000, scoped, tag = 'input window, operand 0']
    #allocation3 [shape = 's32[2]{0}', space=sflag, size = 0x8, scoped, tag = 'scoped memory for tpu_custom_call.1']
    #allocation4 [shape = 's32[2]{0}', space=sflag, size = 0x8, scoped, tag = 'scoped memory for tpu_custom_call.1']
    #allocation5 [shape = 'u8[65536]{0}', space=vmem, size = 0x10000, scoped, tag = 'input window, operand 1, single buffered']
    #allocation6 [shape = 's32[1]{0}', space=sflag, size = 0x4, scoped, tag = 'scoped memory for tpu_custom_call.1']
    #allocation7 [shape = 'u8[8192]{0}', space=vmem, size = 0x2000, scoped, tag = 'output window, operand 0']
    %8 = vsyncpa [#allocation3], 0
    %s9 = scalar_lea.sflag [#allocation3], 1
    %10 = vsyncpa %s9, 0
    %11 = vsyncpa [#allocation6], 0
    %12 = vsyncpa [#allocation4], 0
    %s13 = scalar_lea.sflag [#allocation4], 1
    %14 = vsyncpa %s13, 0
    loop: start=0, step=1, limit=4
    $region2: #{tpu_custom_call.1} parent=1 // loop_pre_header
      _
    $region3: #{tpu_custom_call.1} parent=1 // loop_header
      %s16 = sphi 0, %s20
      %p17 = scmp.ge.s32.totalorder %s16, 4
      %s23 = sphi 0, %s42
      %s24 = sphi 0, %s38
      %s25 = sphi 0, %s34
      %s26 = sphi 0, %s23
      %s27 = sphi 0, %s24
      %s28 = sphi 0, %s25
      %s29 = sphi 0, %s26
      %s30 = sphi 0, %s27
      %s31 = sphi 0, %s28
      %s47 = sphi 0, %s49
      %s50 = sphi 0, %s47
      %s51 = sphi 0, %s50
      %s67 = sphi 0, %s51
      %s75 = sphi 0, %s77
      %s78 = sphi 0, %s75
      %s79 = sphi 0, %s78
      %s95 = sphi 0, %s79
      %s101 = sphi 0, %s103
      %s104 = sphi 0, %s101
      %s105 = sphi 0, %s104
      %s121 = sphi 0, %s105
      %s129 = sphi 0, %s131
      %s132 = sphi 0, %s129
      %s133 = sphi 0, %s132
      %s149 = sphi 0, %s133
    $region4: #{tpu_custom_call.1} parent=1 // loop_header_branch
      %19 = sbr.rel (%p17) target = $region8
    $region5: #{tpu_custom_call.1} parent=1 // loop_body
      %s21 = ssub.s32 %s16, 1
      %s22 = ssub.s32 %s16, 2
      %s32 = sadd.s32 1, %s25
      %p33 = scmp.ge.s32.totalorder %s32, 1
      %s34 = scalar_select %p33, 0, %s32
      %s35 = sadd.s32 1, %s24
      %s36 = scalar_select %p33, %s35, %s24
      %p37 = scmp.ge.s32.totalorder %s36, 1
      %s38 = scalar_select %p37, 0, %s36
      %s39 = sadd.s32 1, %s23
      %s40 = scalar_select %p37, %s39, %s23
      %p41 = scmp.ge.s32.totalorder %s40, 2
      %s42 = scalar_select %p41, 0, %s40
      %s43 = ssub.s32 %s23, %s42
      %s44 = ssub.s32 %s25, %s34
      %s45 = sor.u32 %s43, %s44
      %p46 = scmp.eq.s32.totalorder %s45, 0
      %s48 = sadd.s32 %s47, 1
      %s49 = scalar_select %p46, %s47, %s48
      %p52 = pneg %p46
      %p53 = scmp.eq.s32.totalorder %s16, 1
      %p54 = por %p52, %p53
      %p55 = scmp.ne.s32.totalorder %s47, %s50
      %p56 = scmp.eq.s32.totalorder %s16, 0
      %p57 = por %p55, %p56
      %p58 = scmp.ne.s32.totalorder %s47, %s50
      %p59 = scmp.eq.s32.totalorder %s21, 1
      %p60 = por %p58, %p59
      %p61 = scmp.ne.s32.totalorder %s50, %s51
      %p62 = scmp.eq.s32.totalorder %s21, 0
      %p63 = por %p61, %p62
      %p64 = scmp.ne.s32.totalorder %s50, %s51
      %p65 = scmp.eq.s32.totalorder %s22, 1
      %p66 = por %p64, %p65
      %p68 = scmp.ne.s32.totalorder %s51, %s67
      %p69 = scmp.eq.s32.totalorder %s22, 0
      %p70 = por %p68, %p69
      %s71 = ssub.s32 %s25, %s34
      %s72 = ssub.s32 %s24, %s38
      %s73 = sor.u32 %s71, %s72
      %p74 = scmp.eq.s32.totalorder %s73, 0
      %s76 = sadd.s32 %s75, 1
      %s77 = scalar_select %p74, %s75, %s76
      %p80 = pneg %p74
      %p81 = scmp.eq.s32.totalorder %s16, 1
      %p82 = por %p80, %p81
      %p83 = scmp.ne.s32.totalorder %s75, %s78
      %p84 = scmp.eq.s32.totalorder %s16, 0
      %p85 = por %p83, %p84
      %p86 = scmp.ne.s32.totalorder %s75, %s78
      %p87 = scmp.eq.s32.totalorder %s21, 1
      %p88 = por %p86, %p87
      %p89 = scmp.ne.s32.totalorder %s78, %s79
      %p90 = scmp.eq.s32.totalorder %s21, 0
      %p91 = por %p89, %p90
      %p92 = scmp.ne.s32.totalorder %s78, %s79
      %p93 = scmp.eq.s32.totalorder %s22, 1
      %p94 = por %p92, %p93
      %p96 = scmp.ne.s32.totalorder %s79, %s95
      %p97 = scmp.eq.s32.totalorder %s22, 0
      %p98 = por %p96, %p97
      %s99 = ssub.s32 %s24, %s38
      %p100 = scmp.eq.s32.totalorder %s99, 0
      %s102 = sadd.s32 %s101, 1
      %s103 = scalar_select %p100, %s101, %s102
      %p106 = pneg %p100
      %p107 = scmp.eq.s32.totalorder %s16, 1
      %p108 = por %p106, %p107
      %p109 = scmp.ne.s32.totalorder %s101, %s104
      %p110 = scmp.eq.s32.totalorder %s16, 0
      %p111 = por %p109, %p110
      %p112 = scmp.ne.s32.totalorder %s101, %s104
      %p113 = scmp.eq.s32.totalorder %s21, 1
      %p114 = por %p112, %p113
      %p115 = scmp.ne.s32.totalorder %s104, %s105
      %p116 = scmp.eq.s32.totalorder %s21, 0
      %p117 = por %p115, %p116
      %p118 = scmp.ne.s32.totalorder %s104, %s105
      %p119 = scmp.eq.s32.totalorder %s22, 1
      %p120 = por %p118, %p119
      %p122 = scmp.ne.s32.totalorder %s105, %s121
      %p123 = scmp.eq.s32.totalorder %s22, 0
      %p124 = por %p122, %p123
      %s125 = ssub.s32 %s23, %s42
      %s126 = ssub.s32 %s24, %s38
      %s127 = sor.u32 %s125, %s126
      %p128 = scmp.eq.s32.totalorder %s127, 0
      %s130 = sadd.s32 %s129, 1
      %s131 = scalar_select %p128, %s129, %s130
      %p134 = pneg %p128
      %p135 = scmp.eq.s32.totalorder %s16, 1
      %p136 = por %p134, %p135
      %p137 = scmp.ne.s32.totalorder %s129, %s132
      %p138 = scmp.eq.s32.totalorder %s16, 0
      %p139 = por %p137, %p138
      %p140 = scmp.ne.s32.totalorder %s129, %s132
      %p141 = scmp.eq.s32.totalorder %s21, 1
      %p142 = por %p140, %p141
      %p143 = scmp.ne.s32.totalorder %s132, %s133
      %p144 = scmp.eq.s32.totalorder %s21, 0
      %p145 = por %p143, %p144
      %p146 = scmp.ne.s32.totalorder %s132, %s133
      %p147 = scmp.eq.s32.totalorder %s22, 1
      %p148 = por %p146, %p147
      %p150 = scmp.ne.s32.totalorder %s133, %s149
      %p151 = scmp.eq.s32.totalorder %s22, 0
      %p152 = por %p150, %p151
      %p153 = scmp.le.s32.totalorder 1, %s16
      %p154 = scmp.lt.s32.totalorder %s16, 3
      %p155 = pnand %p153, %p154
      %p156 = pneg %p155
      // Predicated region
      $region9: #{tpu_custom_call.1} parent=5 // pred_check
        _
      $region10: #{tpu_custom_call.1} parent=5 // pred_check_branch
        %158 = sbr.rel (%p155) target = $region12
      $region11: #{tpu_custom_call.1} parent=5 // pred_region
        %s159 = ssub.s32 %s16, 1
        // Predicated region
        $region13: #{tpu_custom_call.1} parent=11 // pred_check
          %p160 = pneg %p91
        $region14: #{tpu_custom_call.1} parent=11 // pred_check_branch
          %162 = sbr.rel (%p160) target = $region16
        $region15: #{tpu_custom_call.1} parent=11 // pred_region
          %s163 = smul.u32 16, %s28
          %165 = vsyncadd [#allocation6], 0
          %s166 = sadd.s32 %s27, %s163
          %s167 = smul.addr %s166, 8
          %s168 = scalar_lea.hbm %s1, %s167
          %s169 = sshll.u32 %s168, 4
          %s170 = int_to_ptr.hbm [resolvable:$true] %s169
          %s171 = sshll.u32 [#allocation5], 4
          %s172 = int_to_ptr.vmem [resolvable:$true] %s171
          %177 = dma.hbm_to_vmem [thread:$0]  %s170, 2048, %s172, [#allocation6], 128, 128, 8
        $region16: #{tpu_custom_call.1} parent=11 // pred_fallthru
          _
        // Predicated region
        $region17: #{tpu_custom_call.1} parent=11 // pred_check
          %p178 = pneg %p117
        $region18: #{tpu_custom_call.1} parent=11 // pred_check_branch
          %180 = sbr.rel (%p178) target = $region20
        $region19: #{tpu_custom_call.1} parent=11 // pred_region
          %p181 = scmp.lt.s32.totalorder %s27, 0
          %s182 = scalar_select %p181, %s27, 0
          %s183 = scalar_lea.vmem %s2, %s182
        $region20: #{tpu_custom_call.1} parent=11 // pred_fallthru
          _
      $region12: #{tpu_custom_call.1} parent=5 // pred_fallthru
        _
      %p184 = scmp.lt.s32.totalorder %s16, 2
      // Predicated region
      $region21: #{tpu_custom_call.1} parent=5 // pred_check
        %p185 = pneg %p184
      $region22: #{tpu_custom_call.1} parent=5 // pred_check_branch
        %187 = sbr.rel (%p185) target = $region24
      $region23: #{tpu_custom_call.1} parent=5 // pred_region
        // Predicated region
        $region25: #{tpu_custom_call.1} parent=23 // pred_check
          %p188 = pneg %p57
        $region26: #{tpu_custom_call.1} parent=23 // pred_check_branch
          %190 = sbr.rel (%p188) target = $region28
        $region27: #{tpu_custom_call.1} parent=23 // pred_region
          %s191 = sand.u32 %s47, 1
          %s192 = scalar_lea.sflag [#allocation3], %s191
          %s193 = sand.u32 %s47, 1
          %s194 = smul.addr %s193, 8
          %s195 = scalar_lea.vmem [#allocation2], %s194
          %197 = vsyncadd %s192, 0
          %s198 = sadd.s32 %s25, %s23
          %s199 = smul.addr %s198, 8
          %s200 = scalar_lea.hbm %s0, %s199
          %s202 = sshll.u32 %s200, 4
          %s203 = int_to_ptr.hbm [resolvable:$true] %s202
          %s204 = sshll.u32 %s195, 4
          %s205 = int_to_ptr.vmem [resolvable:$true] %s204
          %207 = dma.hbm_to_vmem [thread:$0]  %s203, 128, %s205, %s192
        $region28: #{tpu_custom_call.1} parent=23 // pred_fallthru
          _
      $region24: #{tpu_custom_call.1} parent=5 // pred_fallthru
        _
      %p208 = scmp.le.s32.totalorder 1, %s16
      %p209 = scmp.lt.s32.totalorder %s16, 3
      %p210 = pnand %p208, %p209
      %p211 = pneg %p210
      // Predicated region
      $region29: #{tpu_custom_call.1} parent=5 // pred_check
        _
      $region30: #{tpu_custom_call.1} parent=5 // pred_check_branch
        %213 = sbr.rel (%p210) target = $region32
      $region31: #{tpu_custom_call.1} parent=5 // pred_region
        %s214 = ssub.s32 %s16, 1
        %s215 = sand.u32 %s50, 1
        %s216 = scalar_lea.sflag [#allocation3], %s215
        %s217 = sand.u32 %s50, 1
        %s218 = smul.addr %s217, 8
        %s219 = scalar_lea.vmem [#allocation2], %s218
        // Predicated region
        $region33: #{tpu_custom_call.1} parent=31 // pred_check
          %p220 = pneg %p63
        $region34: #{tpu_custom_call.1} parent=31 // pred_check_branch
          %222 = sbr.rel (%p220) target = $region36
        $region35: #{tpu_custom_call.1} parent=31 // pred_region
          %224 = dma.done %s216, 128
        $region36: #{tpu_custom_call.1} parent=31 // pred_fallthru
          _
        // Predicated region
        $region37: #{tpu_custom_call.1} parent=31 // pred_check
          %p225 = pneg %p91
        $region38: #{tpu_custom_call.1} parent=31 // pred_check_branch
          %227 = sbr.rel (%p225) target = $region40
        $region39: #{tpu_custom_call.1} parent=31 // pred_region
          %229 = dma.done [#allocation6], 2048
        $region40: #{tpu_custom_call.1} parent=31 // pred_fallthru
          _
        %s230 = sand.u32 %s50, 1
        %s231 = scalar_lea.sflag [#allocation3], %s230
        %s232 = sand.u32 %s50, 1
        %s233 = smul.addr %s232, 8
        %s234 = scalar_lea.vmem [#allocation2], %s233
        %p235 = pneg %p63
        %p236 = pneg %p60
        %p237 = pneg %p91
        %p238 = pneg %p88
        %p239 = scmp.lt.s32.totalorder %s27, 0
        %s240 = scalar_select %p239, %s27, 0
        %s241 = scalar_lea.vmem %s2, %s240
        %p242 = pneg %p117
        %p243 = pneg %p114
        %p244 = pneg %p145
        %p245 = pneg %p142
        %s246 = sand.u32 %s132, 1
        %s247 = scalar_lea.sflag [#allocation4], %s246
        %s248 = sand.u32 %s132, 1
        %s249 = smul.addr %s248, 8
        %s250 = scalar_lea.vmem [#allocation7], %s249
        %s251 = smul.u32 16, %s28
        %p252 = scmp.lt.s32.totalorder %s27, 0
        %s253 = scalar_select %p252, %s27, 0
        %s254 = scalar_lea.vmem %s2, %s253
        %p255 = scmp.eq.s32.totalorder %s28, 0
        // Predicated region
        $region41: #{tpu_custom_call.1} parent=31 // pred_check
          %p256 = pneg %p255
        $region42: #{tpu_custom_call.1} parent=31 // pred_check_branch
          %258 = sbr.rel (%p256) target = $region44
        $region43: #{tpu_custom_call.1} parent=31 // pred_region
          %259 = vst [vmem:[%s250] sm:$0xff] 0.0
        $region44: #{tpu_custom_call.1} parent=31 // pred_fallthru
          _
        %v260 = vld [vmem:[%s250] sm:$0xff]
        %v261 = vld [vmem:[%s219] sm:$0xff]
        %v262 = vld [vmem:[#allocation5] sm:$0xff]
        %v263 = vld [vmem:[#allocation5 + $0x8] sm:$0xff]
        %v264 = vld [vmem:[#allocation5 + $0x10] sm:$0xff]
        %v265 = vld [vmem:[#allocation5 + $0x18] sm:$0xff]
        %v266 = vld [vmem:[#allocation5 + $0x20] sm:$0xff]
        %v267 = vld [vmem:[#allocation5 + $0x28] sm:$0xff]
        %v268 = vld [vmem:[#allocation5 + $0x30] sm:$0xff]
        %v269 = vld [vmem:[#allocation5 + $0x38] sm:$0xff]
        %v270 = vld [vmem:[#allocation5 + $0x40] sm:$0xff]
        %v271 = vld [vmem:[#allocation5 + $0x48] sm:$0xff]
        %v272 = vld [vmem:[#allocation5 + $0x50] sm:$0xff]
        %v273 = vld [vmem:[#allocation5 + $0x58] sm:$0xff]
        %v274 = vld [vmem:[#allocation5 + $0x60] sm:$0xff]
        %v275 = vld [vmem:[#allocation5 + $0x68] sm:$0xff]
        %v276 = vld [vmem:[#allocation5 + $0x70] sm:$0xff]
        %v277 = vld [vmem:[#allocation5 + $0x78] sm:$0xff]
        %278 = vmatpush.msra.mxu0 %v277
        %279 = vmatpush.msra.mxu0 %v276
        %280 = vmatpush.msra.mxu0 %v275
        %281 = vmatpush.msra.mxu0 %v274
        %282 = vmatpush.msra.mxu0 %v273
        %283 = vmatpush.msra.mxu0 %v272
        %284 = vmatpush.msra.mxu0 %v271
        %285 = vmatpush.msra.mxu0 %v270
        %286 = vmatpush.msra.mxu0 %v269
        %287 = vmatpush.msra.mxu0 %v268
        %288 = vmatpush.msra.mxu0 %v267
        %289 = vmatpush.msra.mxu0 %v266
        %290 = vmatpush.msra.mxu0 %v265
        %291 = vmatpush.msra.mxu0 %v264
        %292 = vmatpush.msra.mxu0 %v263
        %293 = vmatpush.msra.mxu0 %v262
        %294 = vmatmul.f32.gmra.mxu0 %v261
        %v295 = vpop.f32.mrf.mxu0
        %v296 = vadd.f32 0.0, %v295
        %297 = vdwg.mxu0
        %v298 = vadd.f32 %v260, %v296
        %299 = vst [vmem:[%s250] sm:$0xff] %v298
        // Predicated region
        $region45: #{tpu_custom_call.1} parent=31 // pred_check
          %p300 = pneg %p255
        $region46: #{tpu_custom_call.1} parent=31 // pred_check_branch
          %302 = sbr.rel (%p300) target = $region48
        $region47: #{tpu_custom_call.1} parent=31 // pred_region
          %v303 = vld [vmem:[%s250] sm:$0xff]
          %v304 = vld [vmem:[%s254] sm:$0x1]
          %v306 = vperm.slane %v304, 0
          %v308 = vadd.f32 %v303, %v306
          %v309 = vtanh.pop %v308
          %310 = vst [vmem:[%s250] sm:$0xff] %v309
        $region48: #{tpu_custom_call.1} parent=31 // pred_fallthru
          _
        %s311 = sand.u32 %s132, 1
        %s312 = scalar_lea.sflag [#allocation4], %s311
        %s313 = sand.u32 %s132, 1
        %s314 = smul.addr %s313, 8
        %s315 = scalar_lea.vmem [#allocation7], %s314
        // Predicated region
        $region49: #{tpu_custom_call.1} parent=31 // pred_check
          %p316 = pneg %p142
        $region50: #{tpu_custom_call.1} parent=31 // pred_check_branch
          %318 = sbr.rel (%p316) target = $region52
        $region51: #{tpu_custom_call.1} parent=31 // pred_region
          %320 = vsyncadd %s312, 0
          %s321 = sadd.s32 %s27, %s26
          %s322 = smul.addr %s321, 8
          %s323 = scalar_lea.hbm %s3, %s322
          %s325 = sshll.u32 %s315, 4
          %s326 = int_to_ptr.vmem [resolvable:$true] %s325
          %s327 = sshll.u32 %s323, 4
          %s328 = int_to_ptr.hbm [resolvable:$true] %s327
          %330 = dma.vmem_to_hbm [thread:$0]  %s326, 128, %s328, %s312
        $region52: #{tpu_custom_call.1} parent=31 // pred_fallthru
          _
      $region32: #{tpu_custom_call.1} parent=5 // pred_fallthru
        _
      %p331 = scmp.le.s32.totalorder 2, %s16
      // Predicated region
      $region53: #{tpu_custom_call.1} parent=5 // pred_check
        %p332 = pneg %p331
      $region54: #{tpu_custom_call.1} parent=5 // pred_check_branch
        %334 = sbr.rel (%p332) target = $region56
      $region55: #{tpu_custom_call.1} parent=5 // pred_region
        %s335 = ssub.s32 %s16, 2
        // Predicated region
        $region57: #{tpu_custom_call.1} parent=55 // pred_check
          %p336 = pneg %p148
        $region58: #{tpu_custom_call.1} parent=55 // pred_check_branch
          %338 = sbr.rel (%p336) target = $region60
        $region59: #{tpu_custom_call.1} parent=55 // pred_region
          %s339 = sand.u32 %s133, 1
          %s340 = scalar_lea.sflag [#allocation4], %s339
          %s341 = sand.u32 %s133, 1
          %s342 = smul.addr %s341, 8
          %s343 = scalar_lea.vmem [#allocation7], %s342
          %345 = dma.done %s340, 128
        $region60: #{tpu_custom_call.1} parent=55 // pred_fallthru
          _
      $region56: #{tpu_custom_call.1} parent=5 // pred_fallthru
        _
    $region6: #{tpu_custom_call.1} parent=1 // loop_footer
      %s20 = sadd.s32 1, %s16
    $region7: #{tpu_custom_call.1} parent=1 // loop_footer_branch
      %15 = sbr.rel target = $region3
    $region8: #{tpu_custom_call.1} parent=1 // loop_exit
      _
    %346 = vsyncpa [#allocation3], 1
    %s347 = scalar_lea.sflag [#allocation3], 1
    %348 = vsyncpa %s347, 1
    %349 = vsyncpa [#allocation6], 1
    %350 = vsyncpa [#allocation4], 1
    %s351 = scalar_lea.sflag [#allocation4], 1
    %352 = vsyncpa %s351, 1

</llo_original>
